<compile_context>
chip_gen: v7x
topology: tpu7x:2x2x1
jax: 0.10.0
libtpu: 0.0.40
codegen_flags: <defaults>
</compile_context>

<pallas_src>
import jax
import jax.numpy as jnp
from jax.experimental import pallas as pl
from jax.experimental.pallas import tpu as pltpu


def spatt_kernel(g_ref, x_ref, w_ref, b_ref, o_ref):
    # g_ref, x_ref, o_ref: (TB, C, TN)  -- NCHW flattened, spatial on lanes.
    # w_ref: (C, 1) VMEM   BN-folded 1x1-conv weight
    # b_ref: (1,)   SMEM   BN-folded 1x1-conv bias
    g = g_ref[...]
    x = x_ref[...]
    f = jnp.maximum(g + x, 0)                                  # relu (VPU, input dtype)
    w = w_ref[...].astype(jnp.float32)                         # (C, 1), lane-broadcast
    # 1x1 conv -> 1 channel == per-pixel channel reduction (VPU mul + XLU reduce)
    s = jnp.sum(f.astype(jnp.float32) * w[None, :, :], axis=1, keepdims=True)
    s = s + b_ref[0]                                           # (TB, 1, TN)
    psi = jax.nn.sigmoid(s)                                    # EUP
    o_ref[...] = (x * psi.astype(x.dtype)).astype(o_ref.dtype)  # broadcast over C


def _choose_tiling(B, C, N, itemsize):
    """Pick (tb, tn, grid, vmem_limit) for a cdiv (masked-tail) grid."""
    try:
        vmem_cap = int(pltpu.get_tpu_info().vmem_capacity_bytes)
    except Exception:
        vmem_cap = 64 << 20                     # conservative fallback (v7x-sized)

    # Pipelined footprint ~ 3 tensors (g, x, out) x 2 buffers x block_bytes.
    total_budget = min(vmem_cap // 2, 48 << 20)
    block_budget = max(1 << 20, min(4 << 20, total_budget // 6))

    # Spatial tile: multiple of 128 (lane-dense) unless N < 128 (full dim is legal).
    if N >= 128:
        max_tn = max(128, (block_budget // max(1, C * itemsize)) // 128 * 128)
        tn = min(max_tn, (N // 128) * 128)
    else:
        tn = N
    n_sp = pl.cdiv(N, tn)

    # Pack batch elements per block when one spatial tile already covers the map.
    tb = 1
    if n_sp == 1:
        tb = max(1, min(B, block_budget // max(1, C * tn * itemsize)))
    n_b = pl.cdiv(B, tb)

    # Megacore (v7x: 2 TCs): make sure the parallel grid has >= 2 steps.
    if n_b * n_sp < 2:
        if B >= 2:
            tb = (B + 1) // 2
            n_b = pl.cdiv(B, tb)
        elif N >= 256 and tn >= 256 and tn % 128 == 0:
            tn = max(128, ((tn // 2) // 128) * 128)
            n_sp = pl.cdiv(N, tn)

    block_bytes = tb * C * tn * itemsize
    needed = 6 * block_bytes + (2 << 20)
    vmem_limit = int(min(max(needed, 32 << 20), max(32 << 20, vmem_cap // 2)))
    return tb, tn, (n_b, n_sp), vmem_limit


def spattention_pallas(g, x, conv_w, conv_b, bn_gamma, bn_beta, bn_mean, bn_var,
                       eps=1e-5):
    """Forward of spAttention_block (inference-mode BatchNorm folded into conv).

    g, x:     (B, C, H, W) with C == F_int (the reference forward requires
              F_g == F_l == F_int for its shapes to work).
    conv_w:   (1, C, 1, 1)  self.psi Conv2d weight
    conv_b:   (1,)          self.psi Conv2d bias
    bn_*:     (1,)          self.psi BatchNorm2d(1) gamma/beta/running stats
    """
    assert g.shape == x.shape, "g and x must have identical shapes"
    B, C, H, W = x.shape
    assert conv_w.shape == (1, C, 1, 1), "psi conv weight must be (1, C, 1, 1)"
    N = H * W

    g2 = g.reshape(B, C, N)
    x2 = x.reshape(B, C, N)

    # Fold inference BatchNorm into the 1x1 conv:  y = scale*conv(f) + shift
    scale = bn_gamma[0] / jnp.sqrt(bn_var[0] + eps)
    w_eff = (conv_w[0, :, 0, 0] * scale).reshape(C, 1).astype(jnp.float32)
    b_eff = (conv_b[0] * scale + bn_beta[0] - bn_mean[0] * scale)
    b_eff = b_eff.reshape(1).astype(jnp.float32)

    itemsize = x.dtype.itemsize
    tb, tn, grid, vmem_limit = _choose_tiling(B, C, N, itemsize)

    out = pl.pallas_call(
        spatt_kernel,
        out_shape=jax.ShapeDtypeStruct((B, C, N), x.dtype),
        grid=grid,
        in_specs=[
            pl.BlockSpec((tb, C, tn), lambda b, n: (b, 0, n)),
            pl.BlockSpec((tb, C, tn), lambda b, n: (b, 0, n)),
            pl.BlockSpec((C, 1), lambda b, n: (0, 0)),
            pl.BlockSpec(memory_space=pltpu.MemorySpace.SMEM),
        ],
        out_specs=pl.BlockSpec((tb, C, tn), lambda b, n: (b, 0, n)),
        compiler_params=pltpu.CompilerParams(
            dimension_semantics=("parallel", "parallel"),
            vmem_limit_bytes=vmem_limit,
        ),
        cost_estimate=pl.CostEstimate(
            flops=5 * B * C * N,
            transcendentals=B * N,
            bytes_accessed=3 * B * C * N * itemsize,
        ),
    )(g2, x2, w_eff, b_eff)

    return out.reshape(B, C, H, W)


def spattention_reference(g, x, conv_w, conv_b, bn_gamma, bn_beta, bn_mean,
                          bn_var, eps=1e-5):
    """Independent pure-JAX reference (BN applied explicitly, not folded)."""
    f = jnp.maximum(g + x, 0.0)
    s = jnp.einsum('bchw,c->bhw', f, conv_w[0, :, 0, 0]) + conv_b[0]
    s = (s - bn_mean[0]) / jnp.sqrt(bn_var[0] + eps) * bn_gamma[0] + bn_beta[0]
    psi = jax.nn.sigmoid(s)
    return x * psi[:, None, :, :]


if __name__ == "__main__":
    # F_g = F_l = F_int = C (required by the reference forward); r_2 is unused.
    B, C, H, W = 2, 32, 16, 16

    key = jax.random.PRNGKey(0)
    kg, kx, kw, kb, kgam, kbet, kmu, kvar = jax.random.split(key, 8)

    g = jax.random.normal(kg, (B, C, H, W), dtype=jnp.float32)
    x = jax.random.normal(kx, (B, C, H, W), dtype=jnp.float32)

    conv_w = jax.random.normal(kw, (1, C, 1, 1), dtype=jnp.float32) * 0.2
    conv_b = jax.random.normal(kb, (1,), dtype=jnp.float32) * 0.1
    bn_gamma = 1.0 + 0.1 * jax.random.normal(kgam, (1,), dtype=jnp.float32)
    bn_beta = 0.1 * jax.random.normal(kbet, (1,), dtype=jnp.float32)
    bn_mean = 0.1 * jax.random.normal(kmu, (1,), dtype=jnp.float32)
    bn_var = jax.random.uniform(kvar, (1,), dtype=jnp.float32,
                                minval=0.5, maxval=1.5)

    out = spattention_pallas(g, x, conv_w, conv_b,
                             bn_gamma, bn_beta, bn_mean, bn_var)
    out = jax.block_until_ready(out)

    ref = spattention_reference(g, x, conv_w, conv_b,
                                bn_gamma, bn_beta, bn_mean, bn_var)
    assert out.shape == (B, C, H, W)
    assert jnp.allclose(out, ref, atol=1e-4, rtol=1e-4), \
        float(jnp.max(jnp.abs(out - ref)))

    print("KERNEL_OK")
</pallas_src>

<mosaic_0001>
module attributes {stable_mosaic.version = 11 : i64} {
  func.func @spatt_kernel(%arg0: i32, %arg1: i32, %arg2: memref<1x32x256xf32, #tpu.memory_space<vmem>>, %arg3: memref<1x32x256xf32, #tpu.memory_space<vmem>>, %arg4: memref<32x1xf32, #tpu.memory_space<vmem>>, %arg5: memref<1xf32, #tpu.memory_space<smem>>, %arg6: memref<1x32x256xf32, #tpu.memory_space<vmem>>) attributes {dimension_semantics = [#tpu.dimension_semantics<parallel>, #tpu.dimension_semantics<parallel>], iteration_bounds = array<i64: 2, 1>, scalar_prefetch = 0 : i64, scratch_operands = 0 : i64, tpu.core_type = #tpu.core_type<tc>, window_params = [{transform_indices = @transform_0, window_bounds = array<i64: 1, 32, 256>}, {transform_indices = @transform_1, window_bounds = array<i64: 1, 32, 256>}, {pipeline_mode = #tpu.pipeline_mode<synchronous>, transform_indices = @transform_2, window_bounds = array<i64: 32, 1>}, {transform_indices = @transform_3, window_bounds = array<i64: 1>}, {transform_indices = @transform_4, window_bounds = array<i64: 1, 32, 256>}]} {
    %c0 = arith.constant 0 : index
    %c0_0 = arith.constant 0 : index
    %c0_1 = arith.constant 0 : index
    %0 = vector.load %arg2[%c0, %c0_0, %c0_1] : memref<1x32x256xf32, #tpu.memory_space<vmem>>, vector<1x32x256xf32>
    %c0_2 = arith.constant 0 : index
    %c0_3 = arith.constant 0 : index
    %c0_4 = arith.constant 0 : index
    %1 = vector.load %arg3[%c0_2, %c0_3, %c0_4] : memref<1x32x256xf32, #tpu.memory_space<vmem>>, vector<1x32x256xf32>
    %2 = arith.addf %0, %1 : vector<1x32x256xf32>
    %cst = arith.constant 0.000000e+00 : f32
    %3 = vector.broadcast %cst : f32 to vector<1x32x256xf32>
    %4 = arith.maximumf %2, %3 : vector<1x32x256xf32>
    %c0_5 = arith.constant 0 : index
    %c0_6 = arith.constant 0 : index
    %5 = vector.load %arg4[%c0_5, %c0_6] : memref<32x1xf32, #tpu.memory_space<vmem>>, vector<32x1xf32>
    %6 = vector.shape_cast %5 : vector<32x1xf32> to vector<1x32x1xf32>
    %7 = vector.broadcast %6 : vector<1x32x1xf32> to vector<1x32x256xf32>
    %8 = arith.mulf %4, %7 : vector<1x32x256xf32>
    %cst_7 = arith.constant dense<0.000000e+00> : vector<1x256xf32>
    %9 = vector.multi_reduction <add>, %8, %cst_7 [1] : vector<1x32x256xf32> to vector<1x256xf32>
    %10 = vector.shape_cast %9 : vector<1x256xf32> to vector<1x1x256xf32>
    %c0_8 = arith.constant 0 : index
    %11 = memref.load %arg5[%c0_8] : memref<1xf32, #tpu.memory_space<smem>>
    %12 = vector.broadcast %11 : f32 to vector<1x1x256xf32>
    %13 = arith.addf %10, %12 : vector<1x1x256xf32>
    %14 = arith.negf %13 : vector<1x1x256xf32>
    %15 = math.exp %14 : vector<1x1x256xf32>
    %cst_9 = arith.constant 1.000000e+00 : f32
    %16 = vector.broadcast %cst_9 : f32 to vector<1x1x256xf32>
    %17 = arith.addf %16, %15 : vector<1x1x256xf32>
    %18 = arith.divf %16, %17 : vector<1x1x256xf32>
    %19 = vector.broadcast %18 : vector<1x1x256xf32> to vector<1x32x256xf32>
    %20 = arith.mulf %1, %19 : vector<1x32x256xf32>
    %c0_10 = arith.constant 0 : index
    %c0_11 = arith.constant 0 : index
    %c0_12 = arith.constant 0 : index
    %21 = vector.load %arg6[%c0_10, %c0_11, %c0_12] : memref<1x32x256xf32, #tpu.memory_space<vmem>>, vector<1x32x256xf32>
    tpu.vector_store %arg6[%c0_10, %c0_11, %c0_12], %20 {strides = array<i32>} : memref<1x32x256xf32, #tpu.memory_space<vmem>>, vector<1x32x256xf32>,
    return
  }
  func.func @transform_0(%arg0: i32, %arg1: i32) -> (i32, i32, i32) {
    %c0_i32 = arith.constant 0 : i32
    %c0_i32_0 = arith.constant 0 : i32
    return %arg0, %c0_i32, %arg1 : i32, i32, i32
  }
  func.func @transform_1(%arg0: i32, %arg1: i32) -> (i32, i32, i32) {
    %c0_i32 = arith.constant 0 : i32
    %c0_i32_0 = arith.constant 0 : i32
    return %arg0, %c0_i32, %arg1 : i32, i32, i32
  }
  func.func @transform_2(%arg0: i32, %arg1: i32) -> (i32, i32) {
    %c0_i32 = arith.constant 0 : i32
    %c0_i32_0 = arith.constant 0 : i32
    %c0_i32_1 = arith.constant 0 : i32
    return %c0_i32, %c0_i32_0 : i32, i32
  }
  func.func @transform_3(%arg0: i32, %arg1: i32) -> i32 {
    %c0_i32 = arith.constant 0 : i32
    %c0_i32_0 = arith.constant 0 : i32
    return %c0_i32 : i32
  }
  func.func @transform_4(%arg0: i32, %arg1: i32) -> (i32, i32, i32) {
    %c0_i32 = arith.constant 0 : i32
    %c0_i32_0 = arith.constant 0 : i32
    return %arg0, %c0_i32, %arg1 : i32, i32, i32
  }
}

</mosaic_0001>

<llo_original>
// kernel: tpu_custom_call.1
$region0: #{tpu_custom_call.1}
  #allocation0 [shape = 'u32[]', space=smem, size = 0x4, offset = 0x4, fixed_abs, tag = 'smem constant byte address 0x4 - core index']
  #allocation1 [shape = 'u32[144,128]{1,0:T(1,128)}', space=vmem, size = 0x12000, scoped, tag = 'internal scratch']
  #allocation2 [shape = 'f32[1]{0:T(128)S(6)}', space=smem, size = 0x200, scoped, tag = 'scoped memory for tpu_custom_call.1']
  %s0 = inlined_call_operand.hbm [shape: f32[2,32,256], index: 0, kind: input, shape index: {}]
  %s1 = inlined_call_operand.hbm [shape: f32[2,32,256], index: 1, kind: input, shape index: {}]
  %s2 = inlined_call_operand.vmem [shape: f32[32,1], index: 2, kind: input, shape index: {}]
  %s3 = inlined_call_operand.<no memory space> [shape: f32[1], index: 3, kind: input, shape index: {}]
  %s4 = inlined_call_operand.hbm [shape: f32[2,32,256], index: 4, kind: output, shape index: {}]
  %s5 = sld [smem:[#allocation0]]
  $region57: #{tpu_custom_call.1} parent=0
    _
  %s7 = ssub.s32 1, %s5
  %s8 = scalar_select 0, %s7, %s5
  %9 = sst [smem:[#allocation2]] %s3
  $region1: #{tpu_custom_call.1} parent=0
    #allocation3 [shape = 'u8[65536]{0}', space=vmem, size = 0x10000, scoped, tag = 'input window, operand 0']
    #allocation4 [shape = 's32[2]{0}', space=sflag, size = 0x8, scoped, tag = 'scoped memory for tpu_custom_call.1']
    #allocation5 [shape = 's32[2]{0}', space=sflag, size = 0x8, scoped, tag = 'scoped memory for tpu_custom_call.1']
    #allocation6 [shape = 'u8[65536]{0}', space=vmem, size = 0x10000, scoped, tag = 'input window, operand 1']
    #allocation7 [shape = 's32[2]{0}', space=sflag, size = 0x8, scoped, tag = 'scoped memory for tpu_custom_call.1']
    #allocation8 [shape = 'u8[65536]{0}', space=vmem, size = 0x10000, scoped, tag = 'output window, operand 0']
    %10 = vsyncpa [#allocation4], 0
    %s11 = scalar_lea.sflag [#allocation4], 1
    %12 = vsyncpa %s11, 0
    %13 = vsyncpa [#allocation7], 0
    %s14 = scalar_lea.sflag [#allocation7], 1
    %15 = vsyncpa %s14, 0
    %16 = vsyncpa [#allocation5], 0
    %s17 = scalar_lea.sflag [#allocation5], 1
    %18 = vsyncpa %s17, 0
    loop: start=0, step=1, limit=4
    $region2: #{tpu_custom_call.1} parent=1 // loop_pre_header
      _
    $region3: #{tpu_custom_call.1} parent=1 // loop_header
      %s20 = sphi 0, %s24
      %p21 = scmp.ge.s32.totalorder %s20, 4
      %s27 = sphi 0, %s39
      %s28 = sphi 0, %s35
      %s29 = sphi 0, %s27
      %s30 = sphi 0, %s28
      %s31 = sphi 0, %s29
      %s32 = sphi 0, %s30
      %s44 = sphi 0, %s46
      %s47 = sphi 0, %s44
      %s48 = sphi 0, %s47
      %s64 = sphi 0, %s48
      %s72 = sphi 0, %s74
      %s75 = sphi 0, %s72
      %s76 = sphi 0, %s75
      %s92 = sphi 0, %s76
      %s96 = sphi 0, %s96
      %s98 = sphi 0, %s96
      %s99 = sphi 0, %s98
      %s113 = sphi 0, %s99
      %s117 = sphi 0, %s117
      %s119 = sphi 0, %s117
      %s120 = sphi 0, %s119
      %s134 = sphi 0, %s120
      %s142 = sphi 0, %s144
      %s145 = sphi 0, %s142
      %s146 = sphi 0, %s145
      %s162 = sphi 0, %s146
    $region4: #{tpu_custom_call.1} parent=1 // loop_header_branch
      %23 = sbr.rel (%p21) target = $region8
    $region5: #{tpu_custom_call.1} parent=1 // loop_body
      %s25 = ssub.s32 %s20, 1
      %s26 = ssub.s32 %s20, 2
      %s33 = sadd.s32 1, %s28
      %p34 = scmp.ge.s32.totalorder %s33, 1
      %s35 = scalar_select %p34, 0, %s33
      %s36 = sadd.s32 1, %s27
      %s37 = scalar_select %p34, %s36, %s27
      %p38 = scmp.ge.s32.totalorder %s37, 2
      %s39 = scalar_select %p38, 0, %s37
      %s40 = ssub.s32 %s27, %s39
      %s41 = ssub.s32 %s28, %s35
      %s42 = sor.u32 %s40, %s41
      %p43 = scmp.eq.s32.totalorder %s42, 0
      %s45 = sadd.s32 %s44, 1
      %s46 = scalar_select %p43, %s44, %s45
      %p49 = pneg %p43
      %p50 = scmp.eq.s32.totalorder %s20, 1
      %p51 = por %p49, %p50
      %p52 = scmp.ne.s32.totalorder %s44, %s47
      %p53 = scmp.eq.s32.totalorder %s20, 0
      %p54 = por %p52, %p53
      %p55 = scmp.ne.s32.totalorder %s44, %s47
      %p56 = scmp.eq.s32.totalorder %s25, 1
      %p57 = por %p55, %p56
      %p58 = scmp.ne.s32.totalorder %s47, %s48
      %p59 = scmp.eq.s32.totalorder %s25, 0
      %p60 = por %p58, %p59
      %p61 = scmp.ne.s32.totalorder %s47, %s48
      %p62 = scmp.eq.s32.totalorder %s26, 1
      %p63 = por %p61, %p62
      %p65 = scmp.ne.s32.totalorder %s48, %s64
      %p66 = scmp.eq.s32.totalorder %s26, 0
      %p67 = por %p65, %p66
      %s68 = ssub.s32 %s27, %s39
      %s69 = ssub.s32 %s28, %s35
      %s70 = sor.u32 %s68, %s69
      %p71 = scmp.eq.s32.totalorder %s70, 0
      %s73 = sadd.s32 %s72, 1
      %s74 = scalar_select %p71, %s72, %s73
      %p77 = pneg %p71
      %p78 = scmp.eq.s32.totalorder %s20, 1
      %p79 = por %p77, %p78
      %p80 = scmp.ne.s32.totalorder %s72, %s75
      %p81 = scmp.eq.s32.totalorder %s20, 0
      %p82 = por %p80, %p81
      %p83 = scmp.ne.s32.totalorder %s72, %s75
      %p84 = scmp.eq.s32.totalorder %s25, 1
      %p85 = por %p83, %p84
      %p86 = scmp.ne.s32.totalorder %s75, %s76
      %p87 = scmp.eq.s32.totalorder %s25, 0
      %p88 = por %p86, %p87
      %p89 = scmp.ne.s32.totalorder %s75, %s76
      %p90 = scmp.eq.s32.totalorder %s26, 1
      %p91 = por %p89, %p90
      %p93 = scmp.ne.s32.totalorder %s76, %s92
      %p94 = scmp.eq.s32.totalorder %s26, 0
      %p95 = por %p93, %p94
      %s97 = sadd.s32 %s96, 1
      %p100 = scmp.eq.s32.totalorder %s20, 1
      %p101 = scmp.ne.s32.totalorder %s96, %s98
      %p102 = scmp.eq.s32.totalorder %s20, 0
      %p103 = por %p101, %p102
      %p104 = scmp.ne.s32.totalorder %s96, %s98
      %p105 = scmp.eq.s32.totalorder %s25, 1
      %p106 = por %p104, %p105
      %p107 = scmp.ne.s32.totalorder %s98, %s99
      %p108 = scmp.eq.s32.totalorder %s25, 0
      %p109 = por %p107, %p108
      %p110 = scmp.ne.s32.totalorder %s98, %s99
      %p111 = scmp.eq.s32.totalorder %s26, 1
      %p112 = por %p110, %p111
      %p114 = scmp.ne.s32.totalorder %s99, %s113
      %p115 = scmp.eq.s32.totalorder %s26, 0
      %p116 = por %p114, %p115
      %s118 = sadd.s32 %s117, 1
      %p121 = scmp.eq.s32.totalorder %s20, 1
      %p122 = scmp.ne.s32.totalorder %s117, %s119
      %p123 = scmp.eq.s32.totalorder %s20, 0
      %p124 = por %p122, %p123
      %p125 = scmp.ne.s32.totalorder %s117, %s119
      %p126 = scmp.eq.s32.totalorder %s25, 1
      %p127 = por %p125, %p126
      %p128 = scmp.ne.s32.totalorder %s119, %s120
      %p129 = scmp.eq.s32.totalorder %s25, 0
      %p130 = por %p128, %p129
      %p131 = scmp.ne.s32.totalorder %s119, %s120
      %p132 = scmp.eq.s32.totalorder %s26, 1
      %p133 = por %p131, %p132
      %p135 = scmp.ne.s32.totalorder %s120, %s134
      %p136 = scmp.eq.s32.totalorder %s26, 0
      %p137 = por %p135, %p136
      %s138 = ssub.s32 %s27, %s39
      %s139 = ssub.s32 %s28, %s35
      %s140 = sor.u32 %s138, %s139
      %p141 = scmp.eq.s32.totalorder %s140, 0
      %s143 = sadd.s32 %s142, 1
      %s144 = scalar_select %p141, %s142, %s143
      %p147 = pneg %p141
      %p148 = scmp.eq.s32.totalorder %s20, 1
      %p149 = por %p147, %p148
      %p150 = scmp.ne.s32.totalorder %s142, %s145
      %p151 = scmp.eq.s32.totalorder %s20, 0
      %p152 = por %p150, %p151
      %p153 = scmp.ne.s32.totalorder %s142, %s145
      %p154 = scmp.eq.s32.totalorder %s25, 1
      %p155 = por %p153, %p154
      %p156 = scmp.ne.s32.totalorder %s145, %s146
      %p157 = scmp.eq.s32.totalorder %s25, 0
      %p158 = por %p156, %p157
      %p159 = scmp.ne.s32.totalorder %s145, %s146
      %p160 = scmp.eq.s32.totalorder %s26, 1
      %p161 = por %p159, %p160
      %p163 = scmp.ne.s32.totalorder %s146, %s162
      %p164 = scmp.eq.s32.totalorder %s26, 0
      %p165 = por %p163, %p164
      %p166 = scmp.le.s32.totalorder 1, %s20
      %p167 = scmp.lt.s32.totalorder %s20, 3
      %p168 = pnand %p166, %p167
      %p169 = pneg %p168
      // Predicated region
      $region9: #{tpu_custom_call.1} parent=5 // pred_check
        _
      $region10: #{tpu_custom_call.1} parent=5 // pred_check_branch
        %171 = sbr.rel (%p168) target = $region12
      $region11: #{tpu_custom_call.1} parent=5 // pred_region
        %s172 = ssub.s32 %s20, 1
        // Predicated region
        $region13: #{tpu_custom_call.1} parent=11 // pred_check
          %p173 = pneg %p109
        $region14: #{tpu_custom_call.1} parent=11 // pred_check_branch
          %175 = sbr.rel (%p173) target = $region16
        $region15: #{tpu_custom_call.1} parent=11 // pred_region
          _
        $region16: #{tpu_custom_call.1} parent=11 // pred_fallthru
          _
        // Predicated region
        $region17: #{tpu_custom_call.1} parent=11 // pred_check
          %p176 = pneg %p130
        $region18: #{tpu_custom_call.1} parent=11 // pred_check_branch
          %178 = sbr.rel (%p176) target = $region20
        $region19: #{tpu_custom_call.1} parent=11 // pred_region
          _
        $region20: #{tpu_custom_call.1} parent=11 // pred_fallthru
          _
      $region12: #{tpu_custom_call.1} parent=5 // pred_fallthru
        _
      %p179 = scmp.lt.s32.totalorder %s20, 2
      // Predicated region
      $region21: #{tpu_custom_call.1} parent=5 // pred_check
        %p180 = pneg %p179
      $region22: #{tpu_custom_call.1} parent=5 // pred_check_branch
        %182 = sbr.rel (%p180) target = $region24
      $region23: #{tpu_custom_call.1} parent=5 // pred_region
        // Predicated region
        $region25: #{tpu_custom_call.1} parent=23 // pred_check
          %p183 = pneg %p54
        $region26: #{tpu_custom_call.1} parent=23 // pred_check_branch
          %185 = sbr.rel (%p183) target = $region28
        $region27: #{tpu_custom_call.1} parent=23 // pred_region
          %s186 = sand.u32 %s44, 1
          %s187 = scalar_lea.sflag [#allocation4], %s186
          %s188 = sand.u32 %s44, 1
          %s189 = smul.addr %s188, 64
          %s190 = scalar_lea.vmem [#allocation3], %s189
          %s191 = smul.u32 2, %s28
          %s193 = ssub.s32 1024, 1024
          %194 = vsyncadd %s187, %s193
          %s195 = smul.addr %s27, 8
          %s196 = sadd.s32 %s191, %s195
          %s197 = smul.addr %s196, 128
          %s198 = scalar_lea.hbm %s0, %s197
          %s199 = sshll.u32 %s190, 4
          %s200 = int_to_ptr.vmem [resolvable:$true] %s199
          %205 = dma.hbm_to_vmem [thread:$0]  %s198, 1024, %s200, %s187, 256, 256, 16
        $region28: #{tpu_custom_call.1} parent=23 // pred_fallthru
          _
        // Predicated region
        $region29: #{tpu_custom_call.1} parent=23 // pred_check
          %p206 = pneg %p82
        $region30: #{tpu_custom_call.1} parent=23 // pred_check_branch
          %208 = sbr.rel (%p206) target = $region32
        $region31: #{tpu_custom_call.1} parent=23 // pred_region
          %s209 = sand.u32 %s72, 1
          %s210 = scalar_lea.sflag [#allocation7], %s209
          %s211 = sand.u32 %s72, 1
          %s212 = smul.addr %s211, 64
          %s213 = scalar_lea.vmem [#allocation6], %s212
          %s214 = smul.u32 2, %s28
          %s216 = ssub.s32 1024, 1024
          %217 = vsyncadd %s210, %s216
          %s218 = smul.addr %s27, 8
          %s219 = sadd.s32 %s214, %s218
          %s220 = smul.addr %s219, 128
          %s221 = scalar_lea.hbm %s1, %s220
          %s222 = sshll.u32 %s213, 4
          %s223 = int_to_ptr.vmem [resolvable:$true] %s222
          %228 = dma.hbm_to_vmem [thread:$0]  %s221, 1024, %s223, %s210, 256, 256, 16
        $region32: #{tpu_custom_call.1} parent=23 // pred_fallthru
          _
      $region24: #{tpu_custom_call.1} parent=5 // pred_fallthru
        _
      %p229 = scmp.le.s32.totalorder 1, %s20
      %p230 = scmp.lt.s32.totalorder %s20, 3
      %p231 = pnand %p229, %p230
      %p232 = pneg %p231
      // Predicated region
      $region33: #{tpu_custom_call.1} parent=5 // pred_check
        _
      $region34: #{tpu_custom_call.1} parent=5 // pred_check_branch
        %234 = sbr.rel (%p231) target = $region36
      $region35: #{tpu_custom_call.1} parent=5 // pred_region
        %s235 = ssub.s32 %s20, 1
        %s236 = sand.u32 %s47, 1
        %s237 = scalar_lea.sflag [#allocation4], %s236
        %s238 = sand.u32 %s47, 1
        %s239 = smul.addr %s238, 64
        %s240 = scalar_lea.vmem [#allocation3], %s239
        // Predicated region
        $region37: #{tpu_custom_call.1} parent=35 // pred_check
          %p241 = pneg %p60
        $region38: #{tpu_custom_call.1} parent=35 // pred_check_branch
          %243 = sbr.rel (%p241) target = $region40
        $region39: #{tpu_custom_call.1} parent=35 // pred_region
          %244 = dma.done %s237, 1024
        $region40: #{tpu_custom_call.1} parent=35 // pred_fallthru
          _
        %s245 = sand.u32 %s75, 1
        %s246 = scalar_lea.sflag [#allocation7], %s245
        %s247 = sand.u32 %s75, 1
        %s248 = smul.addr %s247, 64
        %s249 = scalar_lea.vmem [#allocation6], %s248
        // Predicated region
        $region41: #{tpu_custom_call.1} parent=35 // pred_check
          %p250 = pneg %p88
        $region42: #{tpu_custom_call.1} parent=35 // pred_check_branch
          %252 = sbr.rel (%p250) target = $region44
        $region43: #{tpu_custom_call.1} parent=35 // pred_region
          %253 = dma.done %s246, 1024
        $region44: #{tpu_custom_call.1} parent=35 // pred_fallthru
          _
        %s254 = sand.u32 %s47, 1
        %s255 = scalar_lea.sflag [#allocation4], %s254
        %s256 = sand.u32 %s47, 1
        %s257 = smul.addr %s256, 64
        %s258 = scalar_lea.vmem [#allocation3], %s257
        %p259 = pneg %p60
        %p260 = pneg %p57
        %s261 = sand.u32 %s75, 1
        %s262 = scalar_lea.sflag [#allocation7], %s261
        %s263 = sand.u32 %s75, 1
        %s264 = smul.addr %s263, 64
        %s265 = scalar_lea.vmem [#allocation6], %s264
        %p266 = pneg %p88
        %p267 = pneg %p85
        %p268 = pneg %p109
        %p269 = pneg %p106
        %p270 = pneg %p130
        %p271 = pneg %p127
        %p272 = pneg %p158
        %p273 = pneg %p155
        %s274 = sand.u32 %s145, 1
        %s275 = scalar_lea.sflag [#allocation5], %s274
        %s276 = sand.u32 %s145, 1
        %s277 = smul.addr %s276, 64
        %s278 = scalar_lea.vmem [#allocation8], %s277
        %s279 = smul.u32 2, %s30
        %s280 = smul.u32 2, %s30
        %s281 = smul.u32 2, %s30
        %v282 = vld [vmem:[%s240] sm:$0xff]
        %v283 = vld [vmem:[%s240 + $0x8] sm:$0xff]
        %v284 = vld [vmem:[%s240 + $0x10] sm:$0xff]
        %v285 = vld [vmem:[%s240 + $0x18] sm:$0xff]
        %v286 = vld [vmem:[%s240 + $0x20] sm:$0xff]
        %v287 = vld [vmem:[%s240 + $0x28] sm:$0xff]
        %v288 = vld [vmem:[%s240 + $0x30] sm:$0xff]
        %v289 = vld [vmem:[%s240 + $0x38] sm:$0xff]
        %v290 = vld [vmem:[%s249] sm:$0xff]
        %v291 = vld [vmem:[%s249 + $0x8] sm:$0xff]
        %v292 = vld [vmem:[%s249 + $0x10] sm:$0xff]
        %v293 = vld [vmem:[%s249 + $0x18] sm:$0xff]
        %v294 = vld [vmem:[%s249 + $0x20] sm:$0xff]
        %v295 = vld [vmem:[%s249 + $0x28] sm:$0xff]
        %v296 = vld [vmem:[%s249 + $0x30] sm:$0xff]
        %v297 = vld [vmem:[%s249 + $0x38] sm:$0xff]
        %v298 = vadd.f32 %v282, %v290
        %v299 = vadd.f32 %v283, %v291
        %v300 = vadd.f32 %v284, %v292
        %v301 = vadd.f32 %v285, %v293
        %v302 = vadd.f32 %v286, %v294
        %v303 = vadd.f32 %v287, %v295
        %v304 = vadd.f32 %v288, %v296
        %v305 = vadd.f32 %v289, %v297
        %v306 = vmax.f32 %v298, 0.0
        %v307 = vmax.f32 %v299, 0.0
        %v308 = vmax.f32 %v300, 0.0
        %v309 = vmax.f32 %v301, 0.0
        %v310 = vmax.f32 %v302, 0.0
        %v311 = vmax.f32 %v303, 0.0
        %v312 = vmax.f32 %v304, 0.0
        %v313 = vmax.f32 %v305, 0.0
        %v314 = vld [vmem:[%s2] sm:$0xff]
        %v315 = vld [vmem:[%s2 + $0x8] sm:$0xff]
        %v316 = vld [vmem:[%s2 + $0x10] sm:$0xff]
        %v317 = vld [vmem:[%s2 + $0x18] sm:$0xff]
        %319 = vset.pattern.permute.xlu0 0
        %320 = vperm.xlu0 %319, %v314
        %v321 = vpop.permute.xlu0 %320
        %324 = vset.pattern.permute.xlu0 0
        %325 = vperm.xlu0 %324, %v315
        %v326 = vpop.permute.xlu0 %325
        %329 = vset.pattern.permute.xlu0 0
        %330 = vperm.xlu0 %329, %v316
        %v331 = vpop.permute.xlu0 %330
        %334 = vset.pattern.permute.xlu0 0
        %335 = vperm.xlu0 %334, %v317
        %v336 = vpop.permute.xlu0 %335
        %v338 = vmul.f32 %v306, %v321
        %v339 = vmul.f32 %v307, %v321
        %v340 = vmul.f32 %v308, %v326
        %v341 = vmul.f32 %v309, %v326
        %v342 = vmul.f32 %v310, %v331
        %v343 = vmul.f32 %v311, %v331
        %v344 = vmul.f32 %v312, %v336
        %v345 = vmul.f32 %v313, %v336
        %v346 = vadd.f32 %v338, %v340
        %v347 = vadd.f32 %v346, %v342
        %v348 = vadd.f32 %v347, %v344
        %v349 = vrot.slane %v348, 4
        %v350 = vadd.f32 %v348, %v349
        %v351 = vrot.slane %v350, 2
        %v352 = vadd.f32 %v350, %v351
        %v353 = vrot.slane %v352, 1
        %v354 = vadd.f32 %v352, %v353
        %v355 = vadd.f32 %v339, %v341
        %v356 = vadd.f32 %v355, %v343
        %v357 = vadd.f32 %v356, %v345
        %v358 = vrot.slane %v357, 4
        %v359 = vadd.f32 %v357, %v358
        %v360 = vrot.slane %v359, 2
        %v361 = vadd.f32 %v359, %v360
        %v362 = vrot.slane %v361, 1
        %v363 = vadd.f32 %v361, %v362
        %s364 = sld [smem:[#allocation2]]
        %v365 = vstv %s364
        %v366 = vadd.f32 %v354, %v365
        %v367 = vadd.f32 %v363, %v365
        %v368 = vxor.u32 %v366, 2147483648
        %v369 = vxor.u32 %v367, 2147483648
        %v370 = vmul.f32 %v368, 1.442695
        %v371 = vpow.pop %v370
        %v372 = vmul.f32 %v369, 1.442695
        %v373 = vpow.pop %v372
        %v374 = vadd.f32 %v371, 1.0
        %v375 = vadd.f32 %v373, 1.0
        %v376 = vrcp.pop %v374
        %v377 = vmul.f32 1.0, %v376
        %v378 = vrcp.pop %v375
        %v379 = vmul.f32 1.0, %v378
        %v380 = vmul.f32 %v290, %v377
        %v381 = vmul.f32 %v291, %v379
        %v382 = vmul.f32 %v292, %v377
        %v383 = vmul.f32 %v293, %v379
        %v384 = vmul.f32 %v294, %v377
        %v385 = vmul.f32 %v295, %v379
        %v386 = vmul.f32 %v296, %v377
        %v387 = vmul.f32 %v297, %v379
        %388 = vst [vmem:[%s278] sm:$0xff] %v380
        %389 = vst [vmem:[%s278 + $0x8] sm:$0xff] %v381
        %390 = vst [vmem:[%s278 + $0x10] sm:$0xff] %v382
        %391 = vst [vmem:[%s278 + $0x18] sm:$0xff] %v383
        %392 = vst [vmem:[%s278 + $0x20] sm:$0xff] %v384
        %393 = vst [vmem:[%s278 + $0x28] sm:$0xff] %v385
        %394 = vst [vmem:[%s278 + $0x30] sm:$0xff] %v386
        %395 = vst [vmem:[%s278 + $0x38] sm:$0xff] %v387
        %s396 = sand.u32 %s145, 1
        %s397 = scalar_lea.sflag [#allocation5], %s396
        %s398 = sand.u32 %s145, 1
        %s399 = smul.addr %s398, 64
        %s400 = scalar_lea.vmem [#allocation8], %s399
        // Predicated region
        $region45: #{tpu_custom_call.1} parent=35 // pred_check
          %p401 = pneg %p155
        $region46: #{tpu_custom_call.1} parent=35 // pred_check_branch
          %403 = sbr.rel (%p401) target = $region48
        $region47: #{tpu_custom_call.1} parent=35 // pred_region
          %s404 = smul.u32 2, %s30
          %s406 = ssub.s32 1024, 1024
          %407 = vsyncadd %s397, %s406
          %s408 = smul.addr %s29, 8
          %s409 = sadd.s32 %s404, %s408
          %s410 = smul.addr %s409, 128
          %s411 = scalar_lea.hbm %s4, %s410
          %s412 = sshll.u32 %s400, 4
          %s413 = int_to_ptr.vmem [resolvable:$true] %s412
          %418 = dma.vmem_to_hbm [thread:$0]  %s413, 1024, %s411, %s397, 256, 256, 16
        $region48: #{tpu_custom_call.1} parent=35 // pred_fallthru
          _
      $region36: #{tpu_custom_call.1} parent=5 // pred_fallthru
        _
      %p419 = scmp.le.s32.totalorder 2, %s20
      // Predicated region
      $region49: #{tpu_custom_call.1} parent=5 // pred_check
        %p420 = pneg %p419
      $region50: #{tpu_custom_call.1} parent=5 // pred_check_branch
        %422 = sbr.rel (%p420) target = $region52
      $region51: #{tpu_custom_call.1} parent=5 // pred_region
        %s423 = ssub.s32 %s20, 2
        // Predicated region
        $region53: #{tpu_custom_call.1} parent=51 // pred_check
          %p424 = pneg %p161
        $region54: #{tpu_custom_call.1} parent=51 // pred_check_branch
          %426 = sbr.rel (%p424) target = $region56
        $region55: #{tpu_custom_call.1} parent=51 // pred_region
          %s427 = sand.u32 %s146, 1
          %s428 = scalar_lea.sflag [#allocation5], %s427
          %s429 = sand.u32 %s146, 1
          %s430 = smul.addr %s429, 64
          %s431 = scalar_lea.vmem [#allocation8], %s430
          %432 = dma.done %s428, 1024
        $region56: #{tpu_custom_call.1} parent=51 // pred_fallthru
          _
      $region52: #{tpu_custom_call.1} parent=5 // pred_fallthru
        _
    $region6: #{tpu_custom_call.1} parent=1 // loop_footer
      %s24 = sadd.s32 1, %s20
    $region7: #{tpu_custom_call.1} parent=1 // loop_footer_branch
      %19 = sbr.rel target = $region3
    $region8: #{tpu_custom_call.1} parent=1 // loop_exit
      _
    %433 = vsyncpa [#allocation4], 1
    %s434 = scalar_lea.sflag [#allocation4], 1
    %435 = vsyncpa %s434, 1
    %436 = vsyncpa [#allocation7], 1
    %s437 = scalar_lea.sflag [#allocation7], 1
    %438 = vsyncpa %s437, 1
    %439 = vsyncpa [#allocation5], 1
    %s440 = scalar_lea.sflag [#allocation5], 1
    %441 = vsyncpa %s440, 1

</llo_original>
